<compile_context>
chip_gen: v5e
topology: v5e:2x2
jax: 0.10.0
libtpu: 0.0.40
codegen_flags: <defaults>
</compile_context>

<pallas_src>
import functools

import jax
import jax.numpy as jnp
from jax.experimental import pallas as pl


# ----------------------------------------------------------------------------
# Fused forward kernel: 5 chained (x @ W + b) [+ ReLU] layers; every operand
# is a whole-array VMEM block (no grid, no pipelining needed at this size).
# ----------------------------------------------------------------------------
def _a2c_fused_kernel(x_ref, m1_ref, b1_ref, m2_ref, b2_ref,
                      w1_ref, c1_ref, w2_ref, c2_ref, w3_ref, c3_ref,
                      o_ref):
    def layer(h, w_ref, b_ref, relu=True):
        y = jnp.dot(h, w_ref[...], preferred_element_type=jnp.float32)
        y = y + b_ref[...]
        return jnp.maximum(y, 0.0) if relu else y

    h = layer(x_ref[...], m1_ref, b1_ref)   # conv1 (dense-unrolled) + ReLU
    h = layer(h, m2_ref, b2_ref)            # conv2 (dense-unrolled) + ReLU == conv_out
    h = layer(h, w1_ref, c1_ref)            # actor || critic Linear(conv_out,256)+ReLU
    h = layer(h, w2_ref, c2_ref)            # block-diag Linear(256,128) x2 + ReLU
    o_ref[...] = layer(h, w3_ref, c3_ref, relu=False)  # lane-padded final layer


# ----------------------------------------------------------------------------
# One-time parameter packing (plain JAX, outside the hot path).
# ----------------------------------------------------------------------------
def _conv_as_dense(w, H, W):
    """Unroll a VALID stride-1 conv (weights w: (Cout,Cin,KH,KW)) acting on a
    channel-major-flattened (Cin*H*W,) input into a dense matrix M such that
    flat(conv(x)) = flat(x) @ M, with PyTorch NCHW flattening on both sides."""
    Cout, Cin, KH, KW = w.shape
    Ho, Wo = H - KH + 1, W - KW + 1
    di = jnp.arange(KH)[:, None, None]
    ih = jnp.arange(H)[None, :, None]
    oh = jnp.arange(Ho)[None, None, :]
    E_h = (ih == oh + di).astype(w.dtype)            # (KH, H, Ho)
    dj = jnp.arange(KW)[:, None, None]
    iw = jnp.arange(W)[None, :, None]
    ow = jnp.arange(Wo)[None, None, :]
    E_w = (iw == ow + dj).astype(w.dtype)            # (KW, W, Wo)
    # M[c,i,j,o,p,q] = sum_{di,dj} w[o,c,di,dj] * [i==p+di] * [j==q+dj]
    M = jnp.einsum("ocab,aip,bjq->cijopq", w, E_h, E_w)
    return M.reshape(Cin * H * W, Cout * Ho * Wo), (Ho, Wo)


def pack_params(params, input_shape, n_actions):
    C, H, W = input_shape
    hid1, hid2 = 256, 128

    m1, (h1, w1) = _conv_as_dense(params["w_c1"], H, W)
    b1 = jnp.repeat(params["b_c1"], h1 * w1)
    m2, (h2, w2) = _conv_as_dense(params["w_c2"], h1, w1)
    b2 = jnp.repeat(params["b_c2"], h2 * w2)

    # Fused actor/critic heads.
    w1cat = jnp.concatenate([params["a_w1"], params["c_w1"]], axis=1)   # (d0, 512)
    c1cat = jnp.concatenate([params["a_b1"], params["c_b1"]])           # (512,)
    w2blk = jnp.zeros((2 * hid1, 2 * hid2), jnp.float32)
    w2blk = w2blk.at[:hid1, :hid2].set(params["a_w2"])
    w2blk = w2blk.at[hid1:, hid2:].set(params["c_w2"])
    c2cat = jnp.concatenate([params["a_b2"], params["c_b2"]])           # (256,)

    out_pad = max(128, -(-(n_actions + 1) // 128) * 128)                # lane-dense
    w3pad = jnp.zeros((2 * hid2, out_pad), jnp.float32)
    w3pad = w3pad.at[:hid2, :n_actions].set(params["a_w3"])
    w3pad = w3pad.at[hid2:, n_actions:n_actions + 1].set(params["c_w3"])
    c3pad = jnp.zeros((out_pad,), jnp.float32)
    c3pad = c3pad.at[:n_actions].set(params["a_b3"])
    c3pad = c3pad.at[n_actions].set(params["c_b3"][0])

    return {
        "m1": m1, "b1": b1.reshape(1, -1),
        "m2": m2, "b2": b2.reshape(1, -1),
        "w1": w1cat, "c1": c1cat.reshape(1, -1),
        "w2": w2blk, "c2": c2cat.reshape(1, -1),
        "w3": w3pad, "c3": c3pad.reshape(1, -1),
    }


# ----------------------------------------------------------------------------
# Forward pass (mirrors A2C.forward) — one Pallas call.
# ----------------------------------------------------------------------------
@functools.partial(jax.jit, static_argnames=("n_actions",))
def a2c_forward_packed(packed, x, *, n_actions):
    B = x.shape[0]
    x_flat = x.reshape(B, -1).astype(jnp.float32)     # PyTorch NCHW flat layout
    m_pad = ((B + 7) // 8) * 8                        # sublane-aligned batch
    if m_pad != B:
        x_flat = jnp.pad(x_flat, ((0, m_pad - B), (0, 0)))
    out_pad = packed["w3"].shape[1]

    out = pl.pallas_call(
        _a2c_fused_kernel,
        out_shape=jax.ShapeDtypeStruct((m_pad, out_pad), jnp.float32),
    )(x_flat,
      packed["m1"], packed["b1"], packed["m2"], packed["b2"],
      packed["w1"], packed["c1"], packed["w2"], packed["c2"],
      packed["w3"], packed["c3"])

    logits = out[:B, :n_actions]
    value = out[:B, n_actions:n_actions + 1]
    return logits, value


def a2c_forward(params, x, input_shape, n_actions):
    packed = pack_params(params, input_shape, n_actions)
    return a2c_forward_packed(packed, x, n_actions=n_actions)


# ----------------------------------------------------------------------------
# Parameter init (deterministic, PyTorch-style uniform bounds).
# ----------------------------------------------------------------------------
def _uniform(key, shape, bound):
    return jax.random.uniform(key, shape, jnp.float32, -bound, bound)


def init_params(key, input_shape, n_actions):
    C_in, H, W = input_shape
    conv_out = 64 * (H - 2) * (W - 2)
    keys = jax.random.split(key, 16)
    p = {}
    fan = C_in * 4
    p["w_c1"] = _uniform(keys[0], (32, C_in, 2, 2), 1.0 / jnp.sqrt(fan))
    p["b_c1"] = _uniform(keys[1], (32,), 1.0 / jnp.sqrt(fan))
    fan = 32 * 4
    p["w_c2"] = _uniform(keys[2], (64, 32, 2, 2), 1.0 / jnp.sqrt(fan))
    p["b_c2"] = _uniform(keys[3], (64,), 1.0 / jnp.sqrt(fan))

    def linear(kw, kb, fan_in, fan_out):
        bound = 1.0 / jnp.sqrt(fan_in)
        return (_uniform(kw, (fan_in, fan_out), bound),
                _uniform(kb, (fan_out,), bound))

    p["a_w1"], p["a_b1"] = linear(keys[4], keys[5], conv_out, 256)
    p["a_w2"], p["a_b2"] = linear(keys[6], keys[7], 256, 128)
    p["a_w3"], p["a_b3"] = linear(keys[8], keys[9], 128, n_actions)
    p["c_w1"], p["c_b1"] = linear(keys[10], keys[11], conv_out, 256)
    p["c_w2"], p["c_b2"] = linear(keys[12], keys[13], 256, 128)
    p["c_w3"], p["c_b3"] = linear(keys[14], keys[15], 128, 1)
    return p


# Pure-JAX reference (same math, no Pallas) for a sanity check.
def _ref_forward(params, x):
    def conv(x, w, b):
        y = jax.lax.conv_general_dilated(
            x, w, window_strides=(1, 1), padding="VALID",
            dimension_numbers=("NCHW", "OIHW", "NCHW"))
        return jnp.maximum(y + b[None, :, None, None], 0.0)

    h = conv(x, params["w_c1"], params["b_c1"])
    h = conv(h, params["w_c2"], params["b_c2"])
    co = h.reshape(x.shape[0], -1)

    def mlp(z, pre):
        z = jnp.maximum(z @ params[pre + "w1"] + params[pre + "b1"], 0.0)
        z = jnp.maximum(z @ params[pre + "w2"] + params[pre + "b2"], 0.0)
        return z @ params[pre + "w3"] + params[pre + "b3"]

    return mlp(co, "a_"), mlp(co, "c_")


if __name__ == "__main__":
    # 2048-style input: 16 one-hot channels on a 4x4 board, 4 actions.
    input_shape = (16, 4, 4)
    n_actions = 4
    batch = 2

    key = jax.random.PRNGKey(0)
    k_params, k_x = jax.random.split(key)
    params = init_params(k_params, input_shape, n_actions)
    x = jax.random.normal(k_x, (batch,) + input_shape, dtype=jnp.float32)

    packed = pack_params(params, input_shape, n_actions)
    logits, value = a2c_forward_packed(packed, x, n_actions=n_actions)
    logits, value = jax.block_until_ready((logits, value))

    ref_logits, ref_value = _ref_forward(params, x)
    assert logits.shape == (batch, n_actions)
    assert value.shape == (batch, 1)
    assert jnp.allclose(logits, ref_logits, atol=1e-2, rtol=1e-2)
    assert jnp.allclose(value, ref_value, atol=1e-2, rtol=1e-2)

    print("KERNEL_OK")
</pallas_src>

<mosaic_0001>
module attributes {stable_mosaic.version = 11 : i64} {
  func.func @_a2c_fused_kernel(%arg0: memref<8x256xf32, #tpu.memory_space<vmem>>, %arg1: memref<256x288xf32, #tpu.memory_space<vmem>>, %arg2: memref<1x288xf32, #tpu.memory_space<vmem>>, %arg3: memref<288x256xf32, #tpu.memory_space<vmem>>, %arg4: memref<1x256xf32, #tpu.memory_space<vmem>>, %arg5: memref<256x512xf32, #tpu.memory_space<vmem>>, %arg6: memref<1x512xf32, #tpu.memory_space<vmem>>, %arg7: memref<512x256xf32, #tpu.memory_space<vmem>>, %arg8: memref<1x256xf32, #tpu.memory_space<vmem>>, %arg9: memref<256x128xf32, #tpu.memory_space<vmem>>, %arg10: memref<1x128xf32, #tpu.memory_space<vmem>>, %arg11: memref<8x128xf32, #tpu.memory_space<vmem>>) attributes {dimension_semantics = [], scalar_prefetch = 0 : i64, scratch_operands = 0 : i64, tpu.core_type = #tpu.core_type<tc>} {
    %c0 = arith.constant 0 : index
    %c0_0 = arith.constant 0 : index
    %0 = vector.load %arg0[%c0, %c0_0] : memref<8x256xf32, #tpu.memory_space<vmem>>, vector<8x256xf32>
    %c0_1 = arith.constant 0 : index
    %c0_2 = arith.constant 0 : index
    %1 = vector.load %arg1[%c0_1, %c0_2] : memref<256x288xf32, #tpu.memory_space<vmem>>, vector<256x288xf32>
    %cst = arith.constant dense<0.000000e+00> : vector<8x288xf32>
    %2 = tpu.matmul %0, %1, %cst {dimension_numbers = #tpu.dot_dimension_numbers<[1], [0], [0], [1], [0, 0, 1, 1], [], []>} : vector<8x256xf32>, vector<256x288xf32>, vector<8x288xf32> -> vector<8x288xf32>
    %c0_3 = arith.constant 0 : index
    %c0_4 = arith.constant 0 : index
    %3 = vector.load %arg2[%c0_3, %c0_4] : memref<1x288xf32, #tpu.memory_space<vmem>>, vector<1x288xf32>
    %4 = vector.broadcast %3 : vector<1x288xf32> to vector<8x288xf32>
    %5 = arith.addf %2, %4 : vector<8x288xf32>
    %cst_5 = arith.constant 0.000000e+00 : f32
    %6 = vector.broadcast %cst_5 : f32 to vector<8x288xf32>
    %7 = arith.maximumf %5, %6 : vector<8x288xf32>
    %c0_6 = arith.constant 0 : index
    %c0_7 = arith.constant 0 : index
    %8 = vector.load %arg3[%c0_6, %c0_7] : memref<288x256xf32, #tpu.memory_space<vmem>>, vector<288x256xf32>
    %cst_8 = arith.constant dense<0.000000e+00> : vector<8x256xf32>
    %9 = tpu.matmul %7, %8, %cst_8 {dimension_numbers = #tpu.dot_dimension_numbers<[1], [0], [0], [1], [0, 0, 1, 1], [], []>} : vector<8x288xf32>, vector<288x256xf32>, vector<8x256xf32> -> vector<8x256xf32>
    %c0_9 = arith.constant 0 : index
    %c0_10 = arith.constant 0 : index
    %10 = vector.load %arg4[%c0_9, %c0_10] : memref<1x256xf32, #tpu.memory_space<vmem>>, vector<1x256xf32>
    %11 = vector.broadcast %10 : vector<1x256xf32> to vector<8x256xf32>
    %12 = arith.addf %9, %11 : vector<8x256xf32>
    %cst_11 = arith.constant 0.000000e+00 : f32
    %13 = vector.broadcast %cst_11 : f32 to vector<8x256xf32>
    %14 = arith.maximumf %12, %13 : vector<8x256xf32>
    %c0_12 = arith.constant 0 : index
    %c0_13 = arith.constant 0 : index
    %15 = vector.load %arg5[%c0_12, %c0_13] : memref<256x512xf32, #tpu.memory_space<vmem>>, vector<256x512xf32>
    %cst_14 = arith.constant dense<0.000000e+00> : vector<8x512xf32>
    %16 = tpu.matmul %14, %15, %cst_14 {dimension_numbers = #tpu.dot_dimension_numbers<[1], [0], [0], [1], [0, 0, 1, 1], [], []>} : vector<8x256xf32>, vector<256x512xf32>, vector<8x512xf32> -> vector<8x512xf32>
    %c0_15 = arith.constant 0 : index
    %c0_16 = arith.constant 0 : index
    %17 = vector.load %arg6[%c0_15, %c0_16] : memref<1x512xf32, #tpu.memory_space<vmem>>, vector<1x512xf32>
    %18 = vector.broadcast %17 : vector<1x512xf32> to vector<8x512xf32>
    %19 = arith.addf %16, %18 : vector<8x512xf32>
    %cst_17 = arith.constant 0.000000e+00 : f32
    %20 = vector.broadcast %cst_17 : f32 to vector<8x512xf32>
    %21 = arith.maximumf %19, %20 : vector<8x512xf32>
    %c0_18 = arith.constant 0 : index
    %c0_19 = arith.constant 0 : index
    %22 = vector.load %arg7[%c0_18, %c0_19] : memref<512x256xf32, #tpu.memory_space<vmem>>, vector<512x256xf32>
    %cst_20 = arith.constant dense<0.000000e+00> : vector<8x256xf32>
    %23 = tpu.matmul %21, %22, %cst_20 {dimension_numbers = #tpu.dot_dimension_numbers<[1], [0], [0], [1], [0, 0, 1, 1], [], []>} : vector<8x512xf32>, vector<512x256xf32>, vector<8x256xf32> -> vector<8x256xf32>
    %c0_21 = arith.constant 0 : index
    %c0_22 = arith.constant 0 : index
    %24 = vector.load %arg8[%c0_21, %c0_22] : memref<1x256xf32, #tpu.memory_space<vmem>>, vector<1x256xf32>
    %25 = vector.broadcast %24 : vector<1x256xf32> to vector<8x256xf32>
    %26 = arith.addf %23, %25 : vector<8x256xf32>
    %cst_23 = arith.constant 0.000000e+00 : f32
    %27 = vector.broadcast %cst_23 : f32 to vector<8x256xf32>
    %28 = arith.maximumf %26, %27 : vector<8x256xf32>
    %c0_24 = arith.constant 0 : index
    %c0_25 = arith.constant 0 : index
    %29 = vector.load %arg9[%c0_24, %c0_25] : memref<256x128xf32, #tpu.memory_space<vmem>>, vector<256x128xf32>
    %cst_26 = arith.constant dense<0.000000e+00> : vector<8x128xf32>
    %30 = tpu.matmul %28, %29, %cst_26 {dimension_numbers = #tpu.dot_dimension_numbers<[1], [0], [0], [1], [0, 0, 1, 1], [], []>} : vector<8x256xf32>, vector<256x128xf32>, vector<8x128xf32> -> vector<8x128xf32>
    %c0_27 = arith.constant 0 : index
    %c0_28 = arith.constant 0 : index
    %31 = vector.load %arg10[%c0_27, %c0_28] : memref<1x128xf32, #tpu.memory_space<vmem>>, vector<1x128xf32>
    %32 = vector.broadcast %31 : vector<1x128xf32> to vector<8x128xf32>
    %33 = arith.addf %30, %32 : vector<8x128xf32>
    %c0_29 = arith.constant 0 : index
    %c0_30 = arith.constant 0 : index
    %34 = vector.load %arg11[%c0_29, %c0_30] : memref<8x128xf32, #tpu.memory_space<vmem>>, vector<8x128xf32>
    tpu.vector_store %arg11[%c0_29, %c0_30], %33 {strides = array<i32>} : memref<8x128xf32, #tpu.memory_space<vmem>>, vector<8x128xf32>,
    return
  }
}

</mosaic_0001>

<llo_original>
// kernel: a2c_forward_packed.1
$region0: #{a2c_forward_packed.1}
  #allocation0 [shape = 'u32[]', space=smem, size = 0x4, offset = 0x4, fixed_abs, tag = 'smem constant byte address 0x4 - core index']
  #allocation1 [shape = 'u32[72,128]{1,0:T(1,128)}', space=vmem, size = 0x9000, scoped, tag = 'internal scratch']
  %s0 = inlined_call_operand.vmem [shape: f32[8,256], index: 0, kind: input, shape index: {}]
  %s1 = inlined_call_operand.vmem [shape: f32[256,288], index: 1, kind: input, shape index: {}]
  %s2 = inlined_call_operand.vmem [shape: f32[1,288], index: 2, kind: input, shape index: {}]
  %s3 = inlined_call_operand.vmem [shape: f32[288,256], index: 3, kind: input, shape index: {}]
  %s4 = inlined_call_operand.vmem [shape: f32[1,256], index: 4, kind: input, shape index: {}]
  %s5 = inlined_call_operand.vmem [shape: f32[256,512], index: 5, kind: input, shape index: {}]
  %s6 = inlined_call_operand.vmem [shape: f32[1,512], index: 6, kind: input, shape index: {}]
  %s7 = inlined_call_operand.hbm [shape: f32[512,256], index: 7, kind: input, shape index: {}]
  %s8 = inlined_call_operand.vmem [shape: f32[1,256], index: 8, kind: input, shape index: {}]
  %s9 = inlined_call_operand.hbm [shape: f32[256,128], index: 9, kind: input, shape index: {}]
  %s10 = inlined_call_operand.vmem [shape: f32[1,128], index: 10, kind: input, shape index: {}]
  %s11 = inlined_call_operand.vmem [shape: f32[8,128], index: 11, kind: output, shape index: {}]
  %s12 = sld [smem:[#allocation0]]
  $region62: #{a2c_forward_packed.1} parent=0
    _
  %s14 = ssub.s32 1, %s12
  %s15 = scalar_select 0, %s14, %s12
  $region1: #{a2c_forward_packed.1} parent=0
    #allocation2 [shape = 'u8[524288]{0}', space=vmem, size = 0x80000, scoped, tag = 'input window, operand 7, single buffered']
    #allocation3 [shape = 's32[1]{0}', space=sflag, size = 0x4, scoped, tag = 'scoped memory for a2c_forward_packed.1']
    #allocation4 [shape = 'u8[131072]{0}', space=vmem, size = 0x20000, scoped, tag = 'input window, operand 9, single buffered']
    #allocation5 [shape = 's32[1]{0}', space=sflag, size = 0x4, scoped, tag = 'scoped memory for a2c_forward_packed.1']
    %16 = vsyncpa [#allocation3], 0
    %17 = vsyncpa [#allocation5], 0
    // Predicated region
    $region2: #{a2c_forward_packed.1} parent=1 // pred_check
      _
    $region3: #{a2c_forward_packed.1} parent=1 // pred_check_branch
      %19 = sbr.rel (0) target = $region5
    $region4: #{a2c_forward_packed.1} parent=1 // pred_region
      _
    $region5: #{a2c_forward_packed.1} parent=1 // pred_fallthru
      _
    // Predicated region
    $region6: #{a2c_forward_packed.1} parent=1 // pred_check
      _
    $region7: #{a2c_forward_packed.1} parent=1 // pred_check_branch
      %21 = sbr.rel (0) target = $region9
    $region8: #{a2c_forward_packed.1} parent=1 // pred_region
      _
    $region9: #{a2c_forward_packed.1} parent=1 // pred_fallthru
      _
    // Predicated region
    $region10: #{a2c_forward_packed.1} parent=1 // pred_check
      _
    $region11: #{a2c_forward_packed.1} parent=1 // pred_check_branch
      %23 = sbr.rel (0) target = $region13
    $region12: #{a2c_forward_packed.1} parent=1 // pred_region
      _
    $region13: #{a2c_forward_packed.1} parent=1 // pred_fallthru
      _
    // Predicated region
    $region14: #{a2c_forward_packed.1} parent=1 // pred_check
      _
    $region15: #{a2c_forward_packed.1} parent=1 // pred_check_branch
      %25 = sbr.rel (0) target = $region17
    $region16: #{a2c_forward_packed.1} parent=1 // pred_region
      _
    $region17: #{a2c_forward_packed.1} parent=1 // pred_fallthru
      _
    // Predicated region
    $region18: #{a2c_forward_packed.1} parent=1 // pred_check
      _
    $region19: #{a2c_forward_packed.1} parent=1 // pred_check_branch
      %27 = sbr.rel (0) target = $region21
    $region20: #{a2c_forward_packed.1} parent=1 // pred_region
      _
    $region21: #{a2c_forward_packed.1} parent=1 // pred_fallthru
      _
    // Predicated region
    $region22: #{a2c_forward_packed.1} parent=1 // pred_check
      _
    $region23: #{a2c_forward_packed.1} parent=1 // pred_check_branch
      %29 = sbr.rel (0) target = $region25
    $region24: #{a2c_forward_packed.1} parent=1 // pred_region
      _
    $region25: #{a2c_forward_packed.1} parent=1 // pred_fallthru
      _
    // Predicated region
    $region26: #{a2c_forward_packed.1} parent=1 // pred_check
      _
    $region27: #{a2c_forward_packed.1} parent=1 // pred_check_branch
      %31 = sbr.rel (0) target = $region29
    $region28: #{a2c_forward_packed.1} parent=1 // pred_region
      _
    $region29: #{a2c_forward_packed.1} parent=1 // pred_fallthru
      _
    // Predicated region
    $region30: #{a2c_forward_packed.1} parent=1 // pred_check
      _
    $region31: #{a2c_forward_packed.1} parent=1 // pred_check_branch
      %33 = sbr.rel (0) target = $region33
    $region32: #{a2c_forward_packed.1} parent=1 // pred_region
      %35 = vsyncadd [#allocation3], 0
      %s36 = sshll.u32 %s7, 4
      %s37 = int_to_ptr.hbm [resolvable:$true] %s36
      %s38 = sshll.u32 [#allocation2], 4
      %s39 = int_to_ptr.vmem [resolvable:$true] %s38
      %44 = dma.hbm_to_vmem [thread:$0]  %s37, 16384, %s39, [#allocation3], 256, 256, 16
    $region33: #{a2c_forward_packed.1} parent=1 // pred_fallthru
      _
    // Predicated region
    $region34: #{a2c_forward_packed.1} parent=1 // pred_check
      _
    $region35: #{a2c_forward_packed.1} parent=1 // pred_check_branch
      %46 = sbr.rel (0) target = $region37
    $region36: #{a2c_forward_packed.1} parent=1 // pred_region
      _
    $region37: #{a2c_forward_packed.1} parent=1 // pred_fallthru
      _
    // Predicated region
    $region38: #{a2c_forward_packed.1} parent=1 // pred_check
      _
    $region39: #{a2c_forward_packed.1} parent=1 // pred_check_branch
      %48 = sbr.rel (0) target = $region41
    $region40: #{a2c_forward_packed.1} parent=1 // pred_region
      %50 = vsyncadd [#allocation5], 0
      %s51 = sshll.u32 %s9, 4
      %s52 = int_to_ptr.hbm [resolvable:$true] %s51
      %s53 = sshll.u32 [#allocation4], 4
      %s54 = int_to_ptr.vmem [resolvable:$true] %s53
      %59 = dma.hbm_to_vmem [thread:$0]  %s52, 4096, %s54, [#allocation5], 128, 128, 8
    $region41: #{a2c_forward_packed.1} parent=1 // pred_fallthru
      _
    // Predicated region
    $region42: #{a2c_forward_packed.1} parent=1 // pred_check
      _
    $region43: #{a2c_forward_packed.1} parent=1 // pred_check_branch
      %61 = sbr.rel (0) target = $region45
    $region44: #{a2c_forward_packed.1} parent=1 // pred_region
      _
    $region45: #{a2c_forward_packed.1} parent=1 // pred_fallthru
      _
    // Predicated region
    $region46: #{a2c_forward_packed.1} parent=1 // pred_check
      _
    $region47: #{a2c_forward_packed.1} parent=1 // pred_check_branch
      %63 = sbr.rel (0) target = $region49
    $region48: #{a2c_forward_packed.1} parent=1 // pred_region
      %65 = dma.done [#allocation3], 16384
    $region49: #{a2c_forward_packed.1} parent=1 // pred_fallthru
      _
    // Predicated region
    $region50: #{a2c_forward_packed.1} parent=1 // pred_check
      _
    $region51: #{a2c_forward_packed.1} parent=1 // pred_check_branch
      %67 = sbr.rel (0) target = $region53
    $region52: #{a2c_forward_packed.1} parent=1 // pred_region
      %69 = dma.done [#allocation5], 4096
    $region53: #{a2c_forward_packed.1} parent=1 // pred_fallthru
      _
    %v70 = vld [vmem:[%s0] sm:$0xff]
    %v71 = vld [vmem:[%s0 + $0x8] sm:$0xff]
    %v72 = vld [vmem:[%s1] sm:$0xff]
    %v73 = vld [vmem:[%s1 + $0x8] sm:$0xff]
    %v74 = vld [vmem:[%s1 + $0x10] sm:$0xff]
    %v75 = vld [vmem:[%s1 + $0x18] sm:$0xff]
    %v76 = vld [vmem:[%s1 + $0x20] sm:$0xff]
    %v77 = vld [vmem:[%s1 + $0x28] sm:$0xff]
    %v78 = vld [vmem:[%s1 + $0x30] sm:$0xff]
    %v79 = vld [vmem:[%s1 + $0x38] sm:$0xff]
    %v80 = vld [vmem:[%s1 + $0x40] sm:$0xff]
    %v81 = vld [vmem:[%s1 + $0x48] sm:$0xff]
    %v82 = vld [vmem:[%s1 + $0x50] sm:$0xff]
    %v83 = vld [vmem:[%s1 + $0x58] sm:$0xff]
    %v84 = vld [vmem:[%s1 + $0x60] sm:$0xff]
    %v85 = vld [vmem:[%s1 + $0x68] sm:$0xff]
    %v86 = vld [vmem:[%s1 + $0x70] sm:$0xff]
    %v87 = vld [vmem:[%s1 + $0x78] sm:$0xff]
    %v88 = vld [vmem:[%s1 + $0x80] sm:$0xff]
    %v89 = vld [vmem:[%s1 + $0x88] sm:$0xff]
    %v90 = vld [vmem:[%s1 + $0x90] sm:$0xff]
    %v91 = vld [vmem:[%s1 + $0x98] sm:$0xff]
    %v92 = vld [vmem:[%s1 + $0xa0] sm:$0xff]
    %v93 = vld [vmem:[%s1 + $0xa8] sm:$0xff]
    %v94 = vld [vmem:[%s1 + $0xb0] sm:$0xff]
    %v95 = vld [vmem:[%s1 + $0xb8] sm:$0xff]
    %v96 = vld [vmem:[%s1 + $0xc0] sm:$0xff]
    %v97 = vld [vmem:[%s1 + $0xc8] sm:$0xff]
    %v98 = vld [vmem:[%s1 + $0xd0] sm:$0xff]
    %v99 = vld [vmem:[%s1 + $0xd8] sm:$0xff]
    %v100 = vld [vmem:[%s1 + $0xe0] sm:$0xff]
    %v101 = vld [vmem:[%s1 + $0xe8] sm:$0xff]
    %v102 = vld [vmem:[%s1 + $0xf0] sm:$0xff]
    %v103 = vld [vmem:[%s1 + $0xf8] sm:$0xff]
    %v104 = vld [vmem:[%s1 + $0x100] sm:$0xff]
    %v105 = vld [vmem:[%s1 + $0x108] sm:$0xff]
    %v106 = vld [vmem:[%s1 + $0x110] sm:$0xff]
    %v107 = vld [vmem:[%s1 + $0x118] sm:$0xff]
    %v108 = vld [vmem:[%s1 + $0x120] sm:$0xff]
    %v109 = vld [vmem:[%s1 + $0x128] sm:$0xff]
    %v110 = vld [vmem:[%s1 + $0x130] sm:$0xff]
    %v111 = vld [vmem:[%s1 + $0x138] sm:$0xff]
    %v112 = vld [vmem:[%s1 + $0x140] sm:$0xff]
    %v113 = vld [vmem:[%s1 + $0x148] sm:$0xff]
    %v114 = vld [vmem:[%s1 + $0x150] sm:$0xff]
    %v115 = vld [vmem:[%s1 + $0x158] sm:$0xff]
    %v116 = vld [vmem:[%s1 + $0x160] sm:$0xff]
    %v117 = vld [vmem:[%s1 + $0x168] sm:$0xff]
    %v118 = vld [vmem:[%s1 + $0x170] sm:$0xff]
    %v119 = vld [vmem:[%s1 + $0x178] sm:$0xff]
    %v120 = vld [vmem:[%s1 + $0x180] sm:$0xff]
    %v121 = vld [vmem:[%s1 + $0x188] sm:$0xff]
    %v122 = vld [vmem:[%s1 + $0x190] sm:$0xff]
    %v123 = vld [vmem:[%s1 + $0x198] sm:$0xff]
    %v124 = vld [vmem:[%s1 + $0x1a0] sm:$0xff]
    %v125 = vld [vmem:[%s1 + $0x1a8] sm:$0xff]
    %v126 = vld [vmem:[%s1 + $0x1b0] sm:$0xff]
    %v127 = vld [vmem:[%s1 + $0x1b8] sm:$0xff]
    %v128 = vld [vmem:[%s1 + $0x1c0] sm:$0xff]
    %v129 = vld [vmem:[%s1 + $0x1c8] sm:$0xff]
    %v130 = vld [vmem:[%s1 + $0x1d0] sm:$0xff]
    %v131 = vld [vmem:[%s1 + $0x1d8] sm:$0xff]
    %v132 = vld [vmem:[%s1 + $0x1e0] sm:$0xff]
    %v133 = vld [vmem:[%s1 + $0x1e8] sm:$0xff]
    %v134 = vld [vmem:[%s1 + $0x1f0] sm:$0xff]
    %v135 = vld [vmem:[%s1 + $0x1f8] sm:$0xff]
    %v136 = vld [vmem:[%s1 + $0x200] sm:$0xff]
    %v137 = vld [vmem:[%s1 + $0x208] sm:$0xff]
    %v138 = vld [vmem:[%s1 + $0x210] sm:$0xff]
    %v139 = vld [vmem:[%s1 + $0x218] sm:$0xff]
    %v140 = vld [vmem:[%s1 + $0x220] sm:$0xff]
    %v141 = vld [vmem:[%s1 + $0x228] sm:$0xff]
    %v142 = vld [vmem:[%s1 + $0x230] sm:$0xff]
    %v143 = vld [vmem:[%s1 + $0x238] sm:$0xff]
    %v144 = vld [vmem:[%s1 + $0x240] sm:$0xff]
    %v145 = vld [vmem:[%s1 + $0x248] sm:$0xff]
    %v146 = vld [vmem:[%s1 + $0x250] sm:$0xff]
    %v147 = vld [vmem:[%s1 + $0x258] sm:$0xff]
    %v148 = vld [vmem:[%s1 + $0x260] sm:$0xff]
    %v149 = vld [vmem:[%s1 + $0x268] sm:$0xff]
    %v150 = vld [vmem:[%s1 + $0x270] sm:$0xff]
    %v151 = vld [vmem:[%s1 + $0x278] sm:$0xff]
    %v152 = vld [vmem:[%s1 + $0x280] sm:$0xff]
    %v153 = vld [vmem:[%s1 + $0x288] sm:$0xff]
    %v154 = vld [vmem:[%s1 + $0x290] sm:$0xff]
    %v155 = vld [vmem:[%s1 + $0x298] sm:$0xff]
    %v156 = vld [vmem:[%s1 + $0x2a0] sm:$0xff]
    %v157 = vld [vmem:[%s1 + $0x2a8] sm:$0xff]
    %v158 = vld [vmem:[%s1 + $0x2b0] sm:$0xff]
    %v159 = vld [vmem:[%s1 + $0x2b8] sm:$0xff]
    %v160 = vld [vmem:[%s1 + $0x2c0] sm:$0xff]
    %v161 = vld [vmem:[%s1 + $0x2c8] sm:$0xff]
    %v162 = vld [vmem:[%s1 + $0x2d0] sm:$0xff]
    %v163 = vld [vmem:[%s1 + $0x2d8] sm:$0xff]
    %v164 = vld [vmem:[%s1 + $0x2e0] sm:$0xff]
    %v165 = vld [vmem:[%s1 + $0x2e8] sm:$0xff]
    %v166 = vld [vmem:[%s1 + $0x2f0] sm:$0xff]
    %v167 = vld [vmem:[%s1 + $0x2f8] sm:$0xff]
    %v168 = vld [vmem:[%s2] sm:$0x7]
    %v170 = vperm.slane %v168, 0
    %v171 = vperm.slane %v168, 1
    %v172 = vperm.slane %v168, 2
    %176 = vmatpush.msra.mxu0 %v117
    %177 = vmatpush.msra.mxu0 %v114
    %178 = vmatpush.msra.mxu0 %v111
    %179 = vmatpush.msra.mxu0 %v108
    %180 = vmatpush.msra.mxu0 %v105
    %181 = vmatpush.msra.mxu0 %v102
    %182 = vmatpush.msra.mxu0 %v99
    %183 = vmatpush.msra.mxu0 %v96
    %184 = vmatpush.msra.mxu0 %v93
    %185 = vmatpush.msra.mxu0 %v90
    %186 = vmatpush.msra.mxu0 %v87
    %187 = vmatpush.msra.mxu0 %v84
    %188 = vmatpush.msra.mxu0 %v81
    %189 = vmatpush.msra.mxu0 %v78
    %190 = vmatpush.msra.mxu0 %v75
    %191 = vmatpush.msra.mxu0 %v72
    %192 = vmatmul.f32.gmra.mxu0 %v70
    %v193 = vpop.f32.mrf.mxu0
    %v194 = vadd.f32 %v170, %v193
    %195 = vdwg.mxu0
    %196 = vmatpush.msra.mxu0 %v165
    %197 = vmatpush.msra.mxu0 %v162
    %198 = vmatpush.msra.mxu0 %v159
    %199 = vmatpush.msra.mxu0 %v156
    %200 = vmatpush.msra.mxu0 %v153
    %201 = vmatpush.msra.mxu0 %v150
    %202 = vmatpush.msra.mxu0 %v147
    %203 = vmatpush.msra.mxu0 %v144
    %204 = vmatpush.msra.mxu0 %v141
    %205 = vmatpush.msra.mxu0 %v138
    %206 = vmatpush.msra.mxu0 %v135
    %207 = vmatpush.msra.mxu0 %v132
    %208 = vmatpush.msra.mxu0 %v129
    %209 = vmatpush.msra.mxu0 %v126
    %210 = vmatpush.msra.mxu0 %v123
    %211 = vmatpush.msra.mxu0 %v120
    %212 = vmatmul.f32.gmra.mxu0 %v71
    %v213 = vpop.f32.mrf.mxu0
    %v214 = vadd.f32 %v194, %v213
    %215 = vdwg.mxu0
    %216 = vmatpush.msra.mxu0 %v118
    %217 = vmatpush.msra.mxu0 %v115
    %218 = vmatpush.msra.mxu0 %v112
    %219 = vmatpush.msra.mxu0 %v109
    %220 = vmatpush.msra.mxu0 %v106
    %221 = vmatpush.msra.mxu0 %v103
    %222 = vmatpush.msra.mxu0 %v100
    %223 = vmatpush.msra.mxu0 %v97
    %224 = vmatpush.msra.mxu0 %v94
    %225 = vmatpush.msra.mxu0 %v91
    %226 = vmatpush.msra.mxu0 %v88
    %227 = vmatpush.msra.mxu0 %v85
    %228 = vmatpush.msra.mxu0 %v82
    %229 = vmatpush.msra.mxu0 %v79
    %230 = vmatpush.msra.mxu0 %v76
    %231 = vmatpush.msra.mxu0 %v73
    %232 = vmatmul.f32.gmra.mxu0 %v70
    %v233 = vpop.f32.mrf.mxu0
    %v234 = vadd.f32 %v171, %v233
    %235 = vdwg.mxu0
    %236 = vmatpush.msra.mxu0 %v166
    %237 = vmatpush.msra.mxu0 %v163
    %238 = vmatpush.msra.mxu0 %v160
    %239 = vmatpush.msra.mxu0 %v157
    %240 = vmatpush.msra.mxu0 %v154
    %241 = vmatpush.msra.mxu0 %v151
    %242 = vmatpush.msra.mxu0 %v148
    %243 = vmatpush.msra.mxu0 %v145
    %244 = vmatpush.msra.mxu0 %v142
    %245 = vmatpush.msra.mxu0 %v139
    %246 = vmatpush.msra.mxu0 %v136
    %247 = vmatpush.msra.mxu0 %v133
    %248 = vmatpush.msra.mxu0 %v130
    %249 = vmatpush.msra.mxu0 %v127
    %250 = vmatpush.msra.mxu0 %v124
    %251 = vmatpush.msra.mxu0 %v121
    %252 = vmatmul.f32.gmra.mxu0 %v71
    %v253 = vpop.f32.mrf.mxu0
    %v254 = vadd.f32 %v234, %v253
    %255 = vdwg.mxu0
    %256 = vmatpush.msra.mxu0 %v119
    %257 = vmatpush.msra.mxu0 %v116
    %258 = vmatpush.msra.mxu0 %v113
    %259 = vmatpush.msra.mxu0 %v110
    %260 = vmatpush.msra.mxu0 %v107
    %261 = vmatpush.msra.mxu0 %v104
    %262 = vmatpush.msra.mxu0 %v101
    %263 = vmatpush.msra.mxu0 %v98
    %264 = vmatpush.msra.mxu0 %v95
    %265 = vmatpush.msra.mxu0 %v92
    %266 = vmatpush.msra.mxu0 %v89
    %267 = vmatpush.msra.mxu0 %v86
    %268 = vmatpush.msra.mxu0 %v83
    %269 = vmatpush.msra.mxu0 %v80
    %270 = vmatpush.msra.mxu0 %v77
    %271 = vmatpush.msra.mxu0 %v74
    %272 = vmatmul.f32.gmra.mxu0 %v70
    %v273 = vpop.f32.mrf.mxu0
    %v274 = vadd.f32 %v172, %v273
    %275 = vdwg.mxu0
    %276 = vmatpush.msra.mxu0 %v167
    %277 = vmatpush.msra.mxu0 %v164
    %278 = vmatpush.msra.mxu0 %v161
    %279 = vmatpush.msra.mxu0 %v158
    %280 = vmatpush.msra.mxu0 %v155
    %281 = vmatpush.msra.mxu0 %v152
    %282 = vmatpush.msra.mxu0 %v149
    %283 = vmatpush.msra.mxu0 %v146
    %284 = vmatpush.msra.mxu0 %v143
    %285 = vmatpush.msra.mxu0 %v140
    %286 = vmatpush.msra.mxu0 %v137
    %287 = vmatpush.msra.mxu0 %v134
    %288 = vmatpush.msra.mxu0 %v131
    %289 = vmatpush.msra.mxu0 %v128
    %290 = vmatpush.msra.mxu0 %v125
    %291 = vmatpush.msra.mxu0 %v122
    %292 = vmatmul.f32.gmra.mxu0 %v71
    %v293 = vpop.f32.mrf.mxu0
    %v294 = vadd.f32 %v274, %v293
    %295 = vdwg.mxu0
    %v296 = vmax.f32 %v214, 0.0
    %v297 = vmax.f32 %v254, 0.0
    %v298 = vmax.f32 %v294, 0.0
    %v299 = vld [vmem:[%s3] sm:$0xff]
    %v300 = vld [vmem:[%s3 + $0x8] sm:$0xff]
    %v301 = vld [vmem:[%s3 + $0x10] sm:$0xff]
    %v302 = vld [vmem:[%s3 + $0x18] sm:$0xff]
    %v303 = vld [vmem:[%s3 + $0x20] sm:$0xff]
    %v304 = vld [vmem:[%s3 + $0x28] sm:$0xff]
    %v305 = vld [vmem:[%s3 + $0x30] sm:$0xff]
    %v306 = vld [vmem:[%s3 + $0x38] sm:$0xff]
    %v307 = vld [vmem:[%s3 + $0x40] sm:$0xff]
    %v308 = vld [vmem:[%s3 + $0x48] sm:$0xff]
    %v309 = vld [vmem:[%s3 + $0x50] sm:$0xff]
    %v310 = vld [vmem:[%s3 + $0x58] sm:$0xff]
    %v311 = vld [vmem:[%s3 + $0x60] sm:$0xff]
    %v312 = vld [vmem:[%s3 + $0x68] sm:$0xff]
    %v313 = vld [vmem:[%s3 + $0x70] sm:$0xff]
    %v314 = vld [vmem:[%s3 + $0x78] sm:$0xff]
    %v315 = vld [vmem:[%s3 + $0x80] sm:$0xff]
    %v316 = vld [vmem:[%s3 + $0x88] sm:$0xff]
    %v317 = vld [vmem:[%s3 + $0x90] sm:$0xff]
    %v318 = vld [vmem:[%s3 + $0x98] sm:$0xff]
    %v319 = vld [vmem:[%s3 + $0xa0] sm:$0xff]
    %v320 = vld [vmem:[%s3 + $0xa8] sm:$0xff]
    %v321 = vld [vmem:[%s3 + $0xb0] sm:$0xff]
    %v322 = vld [vmem:[%s3 + $0xb8] sm:$0xff]
    %v323 = vld [vmem:[%s3 + $0xc0] sm:$0xff]
    %v324 = vld [vmem:[%s3 + $0xc8] sm:$0xff]
    %v325 = vld [vmem:[%s3 + $0xd0] sm:$0xff]
    %v326 = vld [vmem:[%s3 + $0xd8] sm:$0xff]
    %v327 = vld [vmem:[%s3 + $0xe0] sm:$0xff]
    %v328 = vld [vmem:[%s3 + $0xe8] sm:$0xff]
    %v329 = vld [vmem:[%s3 + $0xf0] sm:$0xff]
    %v330 = vld [vmem:[%s3 + $0xf8] sm:$0xff]
    %v331 = vld [vmem:[%s3 + $0x100] sm:$0xff]
    %v332 = vld [vmem:[%s3 + $0x108] sm:$0xff]
    %v333 = vld [vmem:[%s3 + $0x110] sm:$0xff]
    %v334 = vld [vmem:[%s3 + $0x118] sm:$0xff]
    %v335 = vld [vmem:[%s3 + $0x120] sm:$0xff]
    %v336 = vld [vmem:[%s3 + $0x128] sm:$0xff]
    %v337 = vld [vmem:[%s3 + $0x130] sm:$0xff]
    %v338 = vld [vmem:[%s3 + $0x138] sm:$0xff]
    %v339 = vld [vmem:[%s3 + $0x140] sm:$0xff]
    %v340 = vld [vmem:[%s3 + $0x148] sm:$0xff]
    %v341 = vld [vmem:[%s3 + $0x150] sm:$0xff]
    %v342 = vld [vmem:[%s3 + $0x158] sm:$0xff]
    %v343 = vld [vmem:[%s3 + $0x160] sm:$0xff]
    %v344 = vld [vmem:[%s3 + $0x168] sm:$0xff]
    %v345 = vld [vmem:[%s3 + $0x170] sm:$0xff]
    %v346 = vld [vmem:[%s3 + $0x178] sm:$0xff]
    %v347 = vld [vmem:[%s3 + $0x180] sm:$0xff]
    %v348 = vld [vmem:[%s3 + $0x188] sm:$0xff]
    %v349 = vld [vmem:[%s3 + $0x190] sm:$0xff]
    %v350 = vld [vmem:[%s3 + $0x198] sm:$0xff]
    %v351 = vld [vmem:[%s3 + $0x1a0] sm:$0xff]
    %v352 = vld [vmem:[%s3 + $0x1a8] sm:$0xff]
    %v353 = vld [vmem:[%s3 + $0x1b0] sm:$0xff]
    %v354 = vld [vmem:[%s3 + $0x1b8] sm:$0xff]
    %v355 = vld [vmem:[%s3 + $0x1c0] sm:$0xff]
    %v356 = vld [vmem:[%s3 + $0x1c8] sm:$0xff]
    %v357 = vld [vmem:[%s3 + $0x1d0] sm:$0xff]
    %v358 = vld [vmem:[%s3 + $0x1d8] sm:$0xff]
    %v359 = vld [vmem:[%s3 + $0x1e0] sm:$0xff]
    %v360 = vld [vmem:[%s3 + $0x1e8] sm:$0xff]
    %v361 = vld [vmem:[%s3 + $0x1f0] sm:$0xff]
    %v362 = vld [vmem:[%s3 + $0x1f8] sm:$0xff]
    %v363 = vld [vmem:[%s3 + $0x200] sm:$0xff]
    %v364 = vld [vmem:[%s3 + $0x208] sm:$0xff]
    %v365 = vld [vmem:[%s3 + $0x210] sm:$0xff]
    %v366 = vld [vmem:[%s3 + $0x218] sm:$0xff]
    %v367 = vld [vmem:[%s3 + $0x220] sm:$0xff]
    %v368 = vld [vmem:[%s3 + $0x228] sm:$0xff]
    %v369 = vld [vmem:[%s3 + $0x230] sm:$0xff]
    %v370 = vld [vmem:[%s3 + $0x238] sm:$0xff]
    %v371 = vld [vmem:[%s4] sm:$0x3]
    %v373 = vperm.slane %v371, 0
    %v374 = vperm.slane %v371, 1
    %vm377 = vcmask 261120
    %v379 = vsel %vm377, %v298, 0
    %381 = vmatpush.msra.mxu0 %v329
    %382 = vmatpush.msra.mxu0 %v327
    %383 = vmatpush.msra.mxu0 %v325
    %384 = vmatpush.msra.mxu0 %v323
    %385 = vmatpush.msra.mxu0 %v321
    %386 = vmatpush.msra.mxu0 %v319
    %387 = vmatpush.msra.mxu0 %v317
    %388 = vmatpush.msra.mxu0 %v315
    %389 = vmatpush.msra.mxu0 %v313
    %390 = vmatpush.msra.mxu0 %v311
    %391 = vmatpush.msra.mxu0 %v309
    %392 = vmatpush.msra.mxu0 %v307
    %393 = vmatpush.msra.mxu0 %v305
    %394 = vmatpush.msra.mxu0 %v303
    %395 = vmatpush.msra.mxu0 %v301
    %396 = vmatpush.msra.mxu0 %v299
    %397 = vmatmul.f32.gmra.mxu0 %v296
    %v398 = vpop.f32.mrf.mxu0
    %v399 = vadd.f32 %v373, %v398
    %400 = vdwg.mxu0
    %401 = vmatpush.msra.mxu0 %v361
    %402 = vmatpush.msra.mxu0 %v359
    %403 = vmatpush.msra.mxu0 %v357
    %404 = vmatpush.msra.mxu0 %v355
    %405 = vmatpush.msra.mxu0 %v353
    %406 = vmatpush.msra.mxu0 %v351
    %407 = vmatpush.msra.mxu0 %v349
    %408 = vmatpush.msra.mxu0 %v347
    %409 = vmatpush.msra.mxu0 %v345
    %410 = vmatpush.msra.mxu0 %v343
    %411 = vmatpush.msra.mxu0 %v341
    %412 = vmatpush.msra.mxu0 %v339
    %413 = vmatpush.msra.mxu0 %v337
    %414 = vmatpush.msra.mxu0 %v335
    %415 = vmatpush.msra.mxu0 %v333
    %416 = vmatpush.msra.mxu0 %v331
    %417 = vmatmul.f32.gmra.mxu0 %v297
    %v418 = vpop.f32.mrf.mxu0
    %v419 = vadd.f32 %v399, %v418
    %420 = vdwg.mxu0
    %421 = vmatpush.msra.mxu0 0.0
    %422 = vmatpush.msra.mxu0 0.0
    %423 = vmatpush.msra.mxu0 0.0
    %424 = vmatpush.msra.mxu0 0.0
    %425 = vmatpush.msra.mxu0 0.0
    %426 = vmatpush.msra.mxu0 0.0
    %427 = vmatpush.msra.mxu0 0.0
    %428 = vmatpush.msra.mxu0 0.0
    %429 = vmatpush.msra.mxu0 0.0
    %430 = vmatpush.msra.mxu0 0.0
    %431 = vmatpush.msra.mxu0 0.0
    %432 = vmatpush.msra.mxu0 0.0
    %433 = vmatpush.msra.mxu0 %v369
    %434 = vmatpush.msra.mxu0 %v367
    %435 = vmatpush.msra.mxu0 %v365
    %436 = vmatpush.msra.mxu0 %v363
    %437 = vmatmul.f32.gmra.mxu0 %v379
    %v438 = vpop.f32.mrf.mxu0
    %v439 = vadd.f32 %v419, %v438
    %440 = vdwg.mxu0
    %441 = vmatpush.msra.mxu0 %v330
    %442 = vmatpush.msra.mxu0 %v328
    %443 = vmatpush.msra.mxu0 %v326
    %444 = vmatpush.msra.mxu0 %v324
    %445 = vmatpush.msra.mxu0 %v322
    %446 = vmatpush.msra.mxu0 %v320
    %447 = vmatpush.msra.mxu0 %v318
    %448 = vmatpush.msra.mxu0 %v316
    %449 = vmatpush.msra.mxu0 %v314
    %450 = vmatpush.msra.mxu0 %v312
    %451 = vmatpush.msra.mxu0 %v310
    %452 = vmatpush.msra.mxu0 %v308
    %453 = vmatpush.msra.mxu0 %v306
    %454 = vmatpush.msra.mxu0 %v304
    %455 = vmatpush.msra.mxu0 %v302
    %456 = vmatpush.msra.mxu0 %v300
    %457 = vmatmul.f32.gmra.mxu0 %v296
    %v458 = vpop.f32.mrf.mxu0
    %v459 = vadd.f32 %v374, %v458
    %460 = vdwg.mxu0
    %461 = vmatpush.msra.mxu0 %v362
    %462 = vmatpush.msra.mxu0 %v360
    %463 = vmatpush.msra.mxu0 %v358
    %464 = vmatpush.msra.mxu0 %v356
    %465 = vmatpush.msra.mxu0 %v354
    %466 = vmatpush.msra.mxu0 %v352
    %467 = vmatpush.msra.mxu0 %v350
    %468 = vmatpush.msra.mxu0 %v348
    %469 = vmatpush.msra.mxu0 %v346
    %470 = vmatpush.msra.mxu0 %v344
    %471 = vmatpush.msra.mxu0 %v342
    %472 = vmatpush.msra.mxu0 %v340
    %473 = vmatpush.msra.mxu0 %v338
    %474 = vmatpush.msra.mxu0 %v336
    %475 = vmatpush.msra.mxu0 %v334
    %476 = vmatpush.msra.mxu0 %v332
    %477 = vmatmul.f32.gmra.mxu0 %v297
    %v478 = vpop.f32.mrf.mxu0
    %v479 = vadd.f32 %v459, %v478
    %480 = vdwg.mxu0
    %481 = vmatpush.msra.mxu0 0.0
    %482 = vmatpush.msra.mxu0 0.0
    %483 = vmatpush.msra.mxu0 0.0
    %484 = vmatpush.msra.mxu0 0.0
    %485 = vmatpush.msra.mxu0 0.0
    %486 = vmatpush.msra.mxu0 0.0
    %487 = vmatpush.msra.mxu0 0.0
    %488 = vmatpush.msra.mxu0 0.0
    %489 = vmatpush.msra.mxu0 0.0
    %490 = vmatpush.msra.mxu0 0.0
    %491 = vmatpush.msra.mxu0 0.0
    %492 = vmatpush.msra.mxu0 0.0
    %493 = vmatpush.msra.mxu0 %v370
    %494 = vmatpush.msra.mxu0 %v368
    %495 = vmatpush.msra.mxu0 %v366
    %496 = vmatpush.msra.mxu0 %v364
    %497 = vmatmul.f32.gmra.mxu0 %v379
    %v498 = vpop.f32.mrf.mxu0
    %v499 = vadd.f32 %v479, %v498
    %500 = vdwg.mxu0
    %v501 = vmax.f32 %v439, 0.0
    %v502 = vmax.f32 %v499, 0.0
    %v503 = vld [vmem:[%s5] sm:$0xff]
    %v504 = vld [vmem:[%s5 + $0x8] sm:$0xff]
    %v505 = vld [vmem:[%s5 + $0x10] sm:$0xff]
    %v506 = vld [vmem:[%s5 + $0x18] sm:$0xff]
    %v507 = vld [vmem:[%s5 + $0x20] sm:$0xff]
    %v508 = vld [vmem:[%s5 + $0x28] sm:$0xff]
    %v509 = vld [vmem:[%s5 + $0x30] sm:$0xff]
    %v510 = vld [vmem:[%s5 + $0x38] sm:$0xff]
    %v511 = vld [vmem:[%s5 + $0x40] sm:$0xff]
    %v512 = vld [vmem:[%s5 + $0x48] sm:$0xff]
    %v513 = vld [vmem:[%s5 + $0x50] sm:$0xff]
    %v514 = vld [vmem:[%s5 + $0x58] sm:$0xff]
    %v515 = vld [vmem:[%s5 + $0x60] sm:$0xff]
    %v516 = vld [vmem:[%s5 + $0x68] sm:$0xff]
    %v517 = vld [vmem:[%s5 + $0x70] sm:$0xff]
    %v518 = vld [vmem:[%s5 + $0x78] sm:$0xff]
    %v519 = vld [vmem:[%s5 + $0x80] sm:$0xff]
    %v520 = vld [vmem:[%s5 + $0x88] sm:$0xff]
    %v521 = vld [vmem:[%s5 + $0x90] sm:$0xff]
    %v522 = vld [vmem:[%s5 + $0x98] sm:$0xff]
    %v523 = vld [vmem:[%s5 + $0xa0] sm:$0xff]
    %v524 = vld [vmem:[%s5 + $0xa8] sm:$0xff]
    %v525 = vld [vmem:[%s5 + $0xb0] sm:$0xff]
    %v526 = vld [vmem:[%s5 + $0xb8] sm:$0xff]
    %v527 = vld [vmem:[%s5 + $0xc0] sm:$0xff]
    %v528 = vld [vmem:[%s5 + $0xc8] sm:$0xff]
    %v529 = vld [vmem:[%s5 + $0xd0] sm:$0xff]
    %v530 = vld [vmem:[%s5 + $0xd8] sm:$0xff]
    %v531 = vld [vmem:[%s5 + $0xe0] sm:$0xff]
    %v532 = vld [vmem:[%s5 + $0xe8] sm:$0xff]
    %v533 = vld [vmem:[%s5 + $0xf0] sm:$0xff]
    %v534 = vld [vmem:[%s5 + $0xf8] sm:$0xff]
    %v535 = vld [vmem:[%s5 + $0x100] sm:$0xff]
    %v536 = vld [vmem:[%s5 + $0x108] sm:$0xff]
    %v537 = vld [vmem:[%s5 + $0x110] sm:$0xff]
    %v538 = vld [vmem:[%s5 + $0x118] sm:$0xff]
    %v539 = vld [vmem:[%s5 + $0x120] sm:$0xff]
    %v540 = vld [vmem:[%s5 + $0x128] sm:$0xff]
    %v541 = vld [vmem:[%s5 + $0x130] sm:$0xff]
    %v542 = vld [vmem:[%s5 + $0x138] sm:$0xff]
    %v543 = vld [vmem:[%s5 + $0x140] sm:$0xff]
    %v544 = vld [vmem:[%s5 + $0x148] sm:$0xff]
    %v545 = vld [vmem:[%s5 + $0x150] sm:$0xff]
    %v546 = vld [vmem:[%s5 + $0x158] sm:$0xff]
    %v547 = vld [vmem:[%s5 + $0x160] sm:$0xff]
    %v548 = vld [vmem:[%s5 + $0x168] sm:$0xff]
    %v549 = vld [vmem:[%s5 + $0x170] sm:$0xff]
    %v550 = vld [vmem:[%s5 + $0x178] sm:$0xff]
    %v551 = vld [vmem:[%s5 + $0x180] sm:$0xff]
    %v552 = vld [vmem:[%s5 + $0x188] sm:$0xff]
    %v553 = vld [vmem:[%s5 + $0x190] sm:$0xff]
    %v554 = vld [vmem:[%s5 + $0x198] sm:$0xff]
    %v555 = vld [vmem:[%s5 + $0x1a0] sm:$0xff]
    %v556 = vld [vmem:[%s5 + $0x1a8] sm:$0xff]
    %v557 = vld [vmem:[%s5 + $0x1b0] sm:$0xff]
    %v558 = vld [vmem:[%s5 + $0x1b8] sm:$0xff]
    %v559 = vld [vmem:[%s5 + $0x1c0] sm:$0xff]
    %v560 = vld [vmem:[%s5 + $0x1c8] sm:$0xff]
    %v561 = vld [vmem:[%s5 + $0x1d0] sm:$0xff]
    %v562 = vld [vmem:[%s5 + $0x1d8] sm:$0xff]
    %v563 = vld [vmem:[%s5 + $0x1e0] sm:$0xff]
    %v564 = vld [vmem:[%s5 + $0x1e8] sm:$0xff]
    %v565 = vld [vmem:[%s5 + $0x1f0] sm:$0xff]
    %v566 = vld [vmem:[%s5 + $0x1f8] sm:$0xff]
    %v567 = vld [vmem:[%s5 + $0x200] sm:$0xff]
    %v568 = vld [vmem:[%s5 + $0x208] sm:$0xff]
    %v569 = vld [vmem:[%s5 + $0x210] sm:$0xff]
    %v570 = vld [vmem:[%s5 + $0x218] sm:$0xff]
    %v571 = vld [vmem:[%s5 + $0x220] sm:$0xff]
    %v572 = vld [vmem:[%s5 + $0x228] sm:$0xff]
    %v573 = vld [vmem:[%s5 + $0x230] sm:$0xff]
    %v574 = vld [vmem:[%s5 + $0x238] sm:$0xff]
    %v575 = vld [vmem:[%s5 + $0x240] sm:$0xff]
    %v576 = vld [vmem:[%s5 + $0x248] sm:$0xff]
    %v577 = vld [vmem:[%s5 + $0x250] sm:$0xff]
    %v578 = vld [vmem:[%s5 + $0x258] sm:$0xff]
    %v579 = vld [vmem:[%s5 + $0x260] sm:$0xff]
    %v580 = vld [vmem:[%s5 + $0x268] sm:$0xff]
    %v581 = vld [vmem:[%s5 + $0x270] sm:$0xff]
    %v582 = vld [vmem:[%s5 + $0x278] sm:$0xff]
    %v583 = vld [vmem:[%s5 + $0x280] sm:$0xff]
    %v584 = vld [vmem:[%s5 + $0x288] sm:$0xff]
    %v585 = vld [vmem:[%s5 + $0x290] sm:$0xff]
    %v586 = vld [vmem:[%s5 + $0x298] sm:$0xff]
    %v587 = vld [vmem:[%s5 + $0x2a0] sm:$0xff]
    %v588 = vld [vmem:[%s5 + $0x2a8] sm:$0xff]
    %v589 = vld [vmem:[%s5 + $0x2b0] sm:$0xff]
    %v590 = vld [vmem:[%s5 + $0x2b8] sm:$0xff]
    %v591 = vld [vmem:[%s5 + $0x2c0] sm:$0xff]
    %v592 = vld [vmem:[%s5 + $0x2c8] sm:$0xff]
    %v593 = vld [vmem:[%s5 + $0x2d0] sm:$0xff]
    %v594 = vld [vmem:[%s5 + $0x2d8] sm:$0xff]
    %v595 = vld [vmem:[%s5 + $0x2e0] sm:$0xff]
    %v596 = vld [vmem:[%s5 + $0x2e8] sm:$0xff]
    %v597 = vld [vmem:[%s5 + $0x2f0] sm:$0xff]
    %v598 = vld [vmem:[%s5 + $0x2f8] sm:$0xff]
    %v599 = vld [vmem:[%s5 + $0x300] sm:$0xff]
    %v600 = vld [vmem:[%s5 + $0x308] sm:$0xff]
    %v601 = vld [vmem:[%s5 + $0x310] sm:$0xff]
    %v602 = vld [vmem:[%s5 + $0x318] sm:$0xff]
    %v603 = vld [vmem:[%s5 + $0x320] sm:$0xff]
    %v604 = vld [vmem:[%s5 + $0x328] sm:$0xff]
    %v605 = vld [vmem:[%s5 + $0x330] sm:$0xff]
    %v606 = vld [vmem:[%s5 + $0x338] sm:$0xff]
    %v607 = vld [vmem:[%s5 + $0x340] sm:$0xff]
    %v608 = vld [vmem:[%s5 + $0x348] sm:$0xff]
    %v609 = vld [vmem:[%s5 + $0x350] sm:$0xff]
    %v610 = vld [vmem:[%s5 + $0x358] sm:$0xff]
    %v611 = vld [vmem:[%s5 + $0x360] sm:$0xff]
    %v612 = vld [vmem:[%s5 + $0x368] sm:$0xff]
    %v613 = vld [vmem:[%s5 + $0x370] sm:$0xff]
    %v614 = vld [vmem:[%s5 + $0x378] sm:$0xff]
    %v615 = vld [vmem:[%s5 + $0x380] sm:$0xff]
    %v616 = vld [vmem:[%s5 + $0x388] sm:$0xff]
    %v617 = vld [vmem:[%s5 + $0x390] sm:$0xff]
    %v618 = vld [vmem:[%s5 + $0x398] sm:$0xff]
    %v619 = vld [vmem:[%s5 + $0x3a0] sm:$0xff]
    %v620 = vld [vmem:[%s5 + $0x3a8] sm:$0xff]
    %v621 = vld [vmem:[%s5 + $0x3b0] sm:$0xff]
    %v622 = vld [vmem:[%s5 + $0x3b8] sm:$0xff]
    %v623 = vld [vmem:[%s5 + $0x3c0] sm:$0xff]
    %v624 = vld [vmem:[%s5 + $0x3c8] sm:$0xff]
    %v625 = vld [vmem:[%s5 + $0x3d0] sm:$0xff]
    %v626 = vld [vmem:[%s5 + $0x3d8] sm:$0xff]
    %v627 = vld [vmem:[%s5 + $0x3e0] sm:$0xff]
    %v628 = vld [vmem:[%s5 + $0x3e8] sm:$0xff]
    %v629 = vld [vmem:[%s5 + $0x3f0] sm:$0xff]
    %v630 = vld [vmem:[%s5 + $0x3f8] sm:$0xff]
    %v631 = vld [vmem:[%s6] sm:$0xf]
    %v633 = vperm.slane %v631, 0
    %v634 = vperm.slane %v631, 1
    %v635 = vperm.slane %v631, 2
    %v636 = vperm.slane %v631, 3
    %641 = vmatpush.msra.mxu0 %v563
    %642 = vmatpush.msra.mxu0 %v559
    %643 = vmatpush.msra.mxu0 %v555
    %644 = vmatpush.msra.mxu0 %v551
    %645 = vmatpush.msra.mxu0 %v547
    %646 = vmatpush.msra.mxu0 %v543
    %647 = vmatpush.msra.mxu0 %v539
    %648 = vmatpush.msra.mxu0 %v535
    %649 = vmatpush.msra.mxu0 %v531
    %650 = vmatpush.msra.mxu0 %v527
    %651 = vmatpush.msra.mxu0 %v523
    %652 = vmatpush.msra.mxu0 %v519
    %653 = vmatpush.msra.mxu0 %v515
    %654 = vmatpush.msra.mxu0 %v511
    %655 = vmatpush.msra.mxu0 %v507
    %656 = vmatpush.msra.mxu0 %v503
    %657 = vmatmul.f32.gmra.mxu0 %v501
    %v658 = vpop.f32.mrf.mxu0
    %v659 = vadd.f32 %v633, %v658
    %660 = vdwg.mxu0
    %661 = vmatpush.msra.mxu0 %v627
    %662 = vmatpush.msra.mxu0 %v623
    %663 = vmatpush.msra.mxu0 %v619
    %664 = vmatpush.msra.mxu0 %v615
    %665 = vmatpush.msra.mxu0 %v611
    %666 = vmatpush.msra.mxu0 %v607
    %667 = vmatpush.msra.mxu0 %v603
    %668 = vmatpush.msra.mxu0 %v599
    %669 = vmatpush.msra.mxu0 %v595
    %670 = vmatpush.msra.mxu0 %v591
    %671 = vmatpush.msra.mxu0 %v587
    %672 = vmatpush.msra.mxu0 %v583
    %673 = vmatpush.msra.mxu0 %v579
    %674 = vmatpush.msra.mxu0 %v575
    %675 = vmatpush.msra.mxu0 %v571
    %676 = vmatpush.msra.mxu0 %v567
    %677 = vmatmul.f32.gmra.mxu0 %v502
    %v678 = vpop.f32.mrf.mxu0
    %v679 = vadd.f32 %v659, %v678
    %680 = vdwg.mxu0
    %681 = vmatpush.msra.mxu0 %v564
    %682 = vmatpush.msra.mxu0 %v560
    %683 = vmatpush.msra.mxu0 %v556
    %684 = vmatpush.msra.mxu0 %v552
    %685 = vmatpush.msra.mxu0 %v548
    %686 = vmatpush.msra.mxu0 %v544
    %687 = vmatpush.msra.mxu0 %v540
    %688 = vmatpush.msra.mxu0 %v536
    %689 = vmatpush.msra.mxu0 %v532
    %690 = vmatpush.msra.mxu0 %v528
    %691 = vmatpush.msra.mxu0 %v524
    %692 = vmatpush.msra.mxu0 %v520
    %693 = vmatpush.msra.mxu0 %v516
    %694 = vmatpush.msra.mxu0 %v512
    %695 = vmatpush.msra.mxu0 %v508
    %696 = vmatpush.msra.mxu0 %v504
    %697 = vmatmul.f32.gmra.mxu0 %v501
    %v698 = vpop.f32.mrf.mxu0
    %v699 = vadd.f32 %v634, %v698
    %700 = vdwg.mxu0
    %701 = vmatpush.msra.mxu0 %v628
    %702 = vmatpush.msra.mxu0 %v624
    %703 = vmatpush.msra.mxu0 %v620
    %704 = vmatpush.msra.mxu0 %v616
    %705 = vmatpush.msra.mxu0 %v612
    %706 = vmatpush.msra.mxu0 %v608
    %707 = vmatpush.msra.mxu0 %v604
    %708 = vmatpush.msra.mxu0 %v600
    %709 = vmatpush.msra.mxu0 %v596
    %710 = vmatpush.msra.mxu0 %v592
    %711 = vmatpush.msra.mxu0 %v588
    %712 = vmatpush.msra.mxu0 %v584
    %713 = vmatpush.msra.mxu0 %v580
    %714 = vmatpush.msra.mxu0 %v576
    %715 = vmatpush.msra.mxu0 %v572
    %716 = vmatpush.msra.mxu0 %v568
    %717 = vmatmul.f32.gmra.mxu0 %v502
    %v718 = vpop.f32.mrf.mxu0
    %v719 = vadd.f32 %v699, %v718
    %720 = vdwg.mxu0
    %721 = vmatpush.msra.mxu0 %v565
    %722 = vmatpush.msra.mxu0 %v561
    %723 = vmatpush.msra.mxu0 %v557
    %724 = vmatpush.msra.mxu0 %v553
    %725 = vmatpush.msra.mxu0 %v549
    %726 = vmatpush.msra.mxu0 %v545
    %727 = vmatpush.msra.mxu0 %v541
    %728 = vmatpush.msra.mxu0 %v537
    %729 = vmatpush.msra.mxu0 %v533
    %730 = vmatpush.msra.mxu0 %v529
    %731 = vmatpush.msra.mxu0 %v525
    %732 = vmatpush.msra.mxu0 %v521
    %733 = vmatpush.msra.mxu0 %v517
    %734 = vmatpush.msra.mxu0 %v513
    %735 = vmatpush.msra.mxu0 %v509
    %736 = vmatpush.msra.mxu0 %v505
    %737 = vmatmul.f32.gmra.mxu0 %v501
    %v738 = vpop.f32.mrf.mxu0
    %v739 = vadd.f32 %v635, %v738
    %740 = vdwg.mxu0
    %741 = vmatpush.msra.mxu0 %v629
    %742 = vmatpush.msra.mxu0 %v625
    %743 = vmatpush.msra.mxu0 %v621
    %744 = vmatpush.msra.mxu0 %v617
    %745 = vmatpush.msra.mxu0 %v613
    %746 = vmatpush.msra.mxu0 %v609
    %747 = vmatpush.msra.mxu0 %v605
    %748 = vmatpush.msra.mxu0 %v601
    %749 = vmatpush.msra.mxu0 %v597
    %750 = vmatpush.msra.mxu0 %v593
    %751 = vmatpush.msra.mxu0 %v589
    %752 = vmatpush.msra.mxu0 %v585
    %753 = vmatpush.msra.mxu0 %v581
    %754 = vmatpush.msra.mxu0 %v577
    %755 = vmatpush.msra.mxu0 %v573
    %756 = vmatpush.msra.mxu0 %v569
    %757 = vmatmul.f32.gmra.mxu0 %v502
    %v758 = vpop.f32.mrf.mxu0
    %v759 = vadd.f32 %v739, %v758
    %760 = vdwg.mxu0
    %761 = vmatpush.msra.mxu0 %v566
    %762 = vmatpush.msra.mxu0 %v562
    %763 = vmatpush.msra.mxu0 %v558
    %764 = vmatpush.msra.mxu0 %v554
    %765 = vmatpush.msra.mxu0 %v550
    %766 = vmatpush.msra.mxu0 %v546
    %767 = vmatpush.msra.mxu0 %v542
    %768 = vmatpush.msra.mxu0 %v538
    %769 = vmatpush.msra.mxu0 %v534
    %770 = vmatpush.msra.mxu0 %v530
    %771 = vmatpush.msra.mxu0 %v526
    %772 = vmatpush.msra.mxu0 %v522
    %773 = vmatpush.msra.mxu0 %v518
    %774 = vmatpush.msra.mxu0 %v514
    %775 = vmatpush.msra.mxu0 %v510
    %776 = vmatpush.msra.mxu0 %v506
    %777 = vmatmul.f32.gmra.mxu0 %v501
    %v778 = vpop.f32.mrf.mxu0
    %v779 = vadd.f32 %v636, %v778
    %780 = vdwg.mxu0
    %781 = vmatpush.msra.mxu0 %v630
    %782 = vmatpush.msra.mxu0 %v626
    %783 = vmatpush.msra.mxu0 %v622
    %784 = vmatpush.msra.mxu0 %v618
    %785 = vmatpush.msra.mxu0 %v614
    %786 = vmatpush.msra.mxu0 %v610
    %787 = vmatpush.msra.mxu0 %v606
    %788 = vmatpush.msra.mxu0 %v602
    %789 = vmatpush.msra.mxu0 %v598
    %790 = vmatpush.msra.mxu0 %v594
    %791 = vmatpush.msra.mxu0 %v590
    %792 = vmatpush.msra.mxu0 %v586
    %793 = vmatpush.msra.mxu0 %v582
    %794 = vmatpush.msra.mxu0 %v578
    %795 = vmatpush.msra.mxu0 %v574
    %796 = vmatpush.msra.mxu0 %v570
    %797 = vmatmul.f32.gmra.mxu0 %v502
    %v798 = vpop.f32.mrf.mxu0
    %v799 = vadd.f32 %v779, %v798
    %800 = vdwg.mxu0
    %v801 = vmax.f32 %v679, 0.0
    %v802 = vmax.f32 %v719, 0.0
    %v803 = vmax.f32 %v759, 0.0
    %v804 = vmax.f32 %v799, 0.0
    %v805 = vld [vmem:[#allocation2] sm:$0xff]
    %v806 = vld [vmem:[#allocation2 + $0x8] sm:$0xff]
    %v807 = vld [vmem:[#allocation2 + $0x10] sm:$0xff]
    %v808 = vld [vmem:[#allocation2 + $0x18] sm:$0xff]
    %v809 = vld [vmem:[#allocation2 + $0x20] sm:$0xff]
    %v810 = vld [vmem:[#allocation2 + $0x28] sm:$0xff]
    %v811 = vld [vmem:[#allocation2 + $0x30] sm:$0xff]
    %v812 = vld [vmem:[#allocation2 + $0x38] sm:$0xff]
    %v813 = vld [vmem:[#allocation2 + $0x40] sm:$0xff]
    %v814 = vld [vmem:[#allocation2 + $0x48] sm:$0xff]
    %v815 = vld [vmem:[#allocation2 + $0x50] sm:$0xff]
    %v816 = vld [vmem:[#allocation2 + $0x58] sm:$0xff]
    %v817 = vld [vmem:[#allocation2 + $0x60] sm:$0xff]
    %v818 = vld [vmem:[#allocation2 + $0x68] sm:$0xff]
    %v819 = vld [vmem:[#allocation2 + $0x70] sm:$0xff]
    %v820 = vld [vmem:[#allocation2 + $0x78] sm:$0xff]
    %v821 = vld [vmem:[#allocation2 + $0x80] sm:$0xff]
    %v822 = vld [vmem:[#allocation2 + $0x88] sm:$0xff]
    %v823 = vld [vmem:[#allocation2 + $0x90] sm:$0xff]
    %v824 = vld [vmem:[#allocation2 + $0x98] sm:$0xff]
    %v825 = vld [vmem:[#allocation2 + $0xa0] sm:$0xff]
    %v826 = vld [vmem:[#allocation2 + $0xa8] sm:$0xff]
    %v827 = vld [vmem:[#allocation2 + $0xb0] sm:$0xff]
    %v828 = vld [vmem:[#allocation2 + $0xb8] sm:$0xff]
    %v829 = vld [vmem:[#allocation2 + $0xc0] sm:$0xff]
    %v830 = vld [vmem:[#allocation2 + $0xc8] sm:$0xff]
    %v831 = vld [vmem:[#allocation2 + $0xd0] sm:$0xff]
    %v832 = vld [vmem:[#allocation2 + $0xd8] sm:$0xff]
    %v833 = vld [vmem:[#allocation2 + $0xe0] sm:$0xff]
    %v834 = vld [vmem:[#allocation2 + $0xe8] sm:$0xff]
    %v835 = vld [vmem:[#allocation2 + $0xf0] sm:$0xff]
    %v836 = vld [vmem:[#allocation2 + $0xf8] sm:$0xff]
    %v837 = vld [vmem:[#allocation2 + $0x100] sm:$0xff]
    %v838 = vld [vmem:[#allocation2 + $0x108] sm:$0xff]
    %v839 = vld [vmem:[#allocation2 + $0x110] sm:$0xff]
    %v840 = vld [vmem:[#allocation2 + $0x118] sm:$0xff]
    %v841 = vld [vmem:[#allocation2 + $0x120] sm:$0xff]
    %v842 = vld [vmem:[#allocation2 + $0x128] sm:$0xff]
    %v843 = vld [vmem:[#allocation2 + $0x130] sm:$0xff]
    %v844 = vld [vmem:[#allocation2 + $0x138] sm:$0xff]
    %v845 = vld [vmem:[#allocation2 + $0x140] sm:$0xff]
    %v846 = vld [vmem:[#allocation2 + $0x148] sm:$0xff]
    %v847 = vld [vmem:[#allocation2 + $0x150] sm:$0xff]
    %v848 = vld [vmem:[#allocation2 + $0x158] sm:$0xff]
    %v849 = vld [vmem:[#allocation2 + $0x160] sm:$0xff]
    %v850 = vld [vmem:[#allocation2 + $0x168] sm:$0xff]
    %v851 = vld [vmem:[#allocation2 + $0x170] sm:$0xff]
    %v852 = vld [vmem:[#allocation2 + $0x178] sm:$0xff]
    %v853 = vld [vmem:[#allocation2 + $0x180] sm:$0xff]
    %v854 = vld [vmem:[#allocation2 + $0x188] sm:$0xff]
    %v855 = vld [vmem:[#allocation2 + $0x190] sm:$0xff]
    %v856 = vld [vmem:[#allocation2 + $0x198] sm:$0xff]
    %v857 = vld [vmem:[#allocation2 + $0x1a0] sm:$0xff]
    %v858 = vld [vmem:[#allocation2 + $0x1a8] sm:$0xff]
    %v859 = vld [vmem:[#allocation2 + $0x1b0] sm:$0xff]
    %v860 = vld [vmem:[#allocation2 + $0x1b8] sm:$0xff]
    %v861 = vld [vmem:[#allocation2 + $0x1c0] sm:$0xff]
    %v862 = vld [vmem:[#allocation2 + $0x1c8] sm:$0xff]
    %v863 = vld [vmem:[#allocation2 + $0x1d0] sm:$0xff]
    %v864 = vld [vmem:[#allocation2 + $0x1d8] sm:$0xff]
    %v865 = vld [vmem:[#allocation2 + $0x1e0] sm:$0xff]
    %v866 = vld [vmem:[#allocation2 + $0x1e8] sm:$0xff]
    %v867 = vld [vmem:[#allocation2 + $0x1f0] sm:$0xff]
    %v868 = vld [vmem:[#allocation2 + $0x1f8] sm:$0xff]
    %v869 = vld [vmem:[#allocation2 + $0x200] sm:$0xff]
    %v870 = vld [vmem:[#allocation2 + $0x208] sm:$0xff]
    %v871 = vld [vmem:[#allocation2 + $0x210] sm:$0xff]
    %v872 = vld [vmem:[#allocation2 + $0x218] sm:$0xff]
    %v873 = vld [vmem:[#allocation2 + $0x220] sm:$0xff]
    %v874 = vld [vmem:[#allocation2 + $0x228] sm:$0xff]
    %v875 = vld [vmem:[#allocation2 + $0x230] sm:$0xff]
    %v876 = vld [vmem:[#allocation2 + $0x238] sm:$0xff]
    %v877 = vld [vmem:[#allocation2 + $0x240] sm:$0xff]
    %v878 = vld [vmem:[#allocation2 + $0x248] sm:$0xff]
    %v879 = vld [vmem:[#allocation2 + $0x250] sm:$0xff]
    %v880 = vld [vmem:[#allocation2 + $0x258] sm:$0xff]
    %v881 = vld [vmem:[#allocation2 + $0x260] sm:$0xff]
    %v882 = vld [vmem:[#allocation2 + $0x268] sm:$0xff]
    %v883 = vld [vmem:[#allocation2 + $0x270] sm:$0xff]
    %v884 = vld [vmem:[#allocation2 + $0x278] sm:$0xff]
    %v885 = vld [vmem:[#allocation2 + $0x280] sm:$0xff]
    %v886 = vld [vmem:[#allocation2 + $0x288] sm:$0xff]
    %v887 = vld [vmem:[#allocation2 + $0x290] sm:$0xff]
    %v888 = vld [vmem:[#allocation2 + $0x298] sm:$0xff]
    %v889 = vld [vmem:[#allocation2 + $0x2a0] sm:$0xff]
    %v890 = vld [vmem:[#allocation2 + $0x2a8] sm:$0xff]
    %v891 = vld [vmem:[#allocation2 + $0x2b0] sm:$0xff]
    %v892 = vld [vmem:[#allocation2 + $0x2b8] sm:$0xff]
    %v893 = vld [vmem:[#allocation2 + $0x2c0] sm:$0xff]
    %v894 = vld [vmem:[#allocation2 + $0x2c8] sm:$0xff]
    %v895 = vld [vmem:[#allocation2 + $0x2d0] sm:$0xff]
    %v896 = vld [vmem:[#allocation2 + $0x2d8] sm:$0xff]
    %v897 = vld [vmem:[#allocation2 + $0x2e0] sm:$0xff]
    %v898 = vld [vmem:[#allocation2 + $0x2e8] sm:$0xff]
    %v899 = vld [vmem:[#allocation2 + $0x2f0] sm:$0xff]
    %v900 = vld [vmem:[#allocation2 + $0x2f8] sm:$0xff]
    %v901 = vld [vmem:[#allocation2 + $0x300] sm:$0xff]
    %v902 = vld [vmem:[#allocation2 + $0x308] sm:$0xff]
    %v903 = vld [vmem:[#allocation2 + $0x310] sm:$0xff]
    %v904 = vld [vmem:[#allocation2 + $0x318] sm:$0xff]
    %v905 = vld [vmem:[#allocation2 + $0x320] sm:$0xff]
    %v906 = vld [vmem:[#allocation2 + $0x328] sm:$0xff]
    %v907 = vld [vmem:[#allocation2 + $0x330] sm:$0xff]
    %v908 = vld [vmem:[#allocation2 + $0x338] sm:$0xff]
    %v909 = vld [vmem:[#allocation2 + $0x340] sm:$0xff]
    %v910 = vld [vmem:[#allocation2 + $0x348] sm:$0xff]
    %v911 = vld [vmem:[#allocation2 + $0x350] sm:$0xff]
    %v912 = vld [vmem:[#allocation2 + $0x358] sm:$0xff]
    %v913 = vld [vmem:[#allocation2 + $0x360] sm:$0xff]
    %v914 = vld [vmem:[#allocation2 + $0x368] sm:$0xff]
    %v915 = vld [vmem:[#allocation2 + $0x370] sm:$0xff]
    %v916 = vld [vmem:[#allocation2 + $0x378] sm:$0xff]
    %v917 = vld [vmem:[#allocation2 + $0x380] sm:$0xff]
    %v918 = vld [vmem:[#allocation2 + $0x388] sm:$0xff]
    %v919 = vld [vmem:[#allocation2 + $0x390] sm:$0xff]
    %v920 = vld [vmem:[#allocation2 + $0x398] sm:$0xff]
    %v921 = vld [vmem:[#allocation2 + $0x3a0] sm:$0xff]
    %v922 = vld [vmem:[#allocation2 + $0x3a8] sm:$0xff]
    %v923 = vld [vmem:[#allocation2 + $0x3b0] sm:$0xff]
    %v924 = vld [vmem:[#allocation2 + $0x3b8] sm:$0xff]
    %v925 = vld [vmem:[#allocation2 + $0x3c0] sm:$0xff]
    %v926 = vld [vmem:[#allocation2 + $0x3c8] sm:$0xff]
    %v927 = vld [vmem:[#allocation2 + $0x3d0] sm:$0xff]
    %v928 = vld [vmem:[#allocation2 + $0x3d8] sm:$0xff]
    %v929 = vld [vmem:[#allocation2 + $0x3e0] sm:$0xff]
    %v930 = vld [vmem:[#allocation2 + $0x3e8] sm:$0xff]
    %v931 = vld [vmem:[#allocation2 + $0x3f0] sm:$0xff]
    %v932 = vld [vmem:[#allocation2 + $0x3f8] sm:$0xff]
    %v933 = vld [vmem:[%s8] sm:$0x3]
    %v935 = vperm.slane %v933, 0
    %v936 = vperm.slane %v933, 1
    %939 = vmatpush.msra.mxu0 %v835
    %940 = vmatpush.msra.mxu0 %v833
    %941 = vmatpush.msra.mxu0 %v831
    %942 = vmatpush.msra.mxu0 %v829
    %943 = vmatpush.msra.mxu0 %v827
    %944 = vmatpush.msra.mxu0 %v825
    %945 = vmatpush.msra.mxu0 %v823
    %946 = vmatpush.msra.mxu0 %v821
    %947 = vmatpush.msra.mxu0 %v819
    %948 = vmatpush.msra.mxu0 %v817
    %949 = vmatpush.msra.mxu0 %v815
    %950 = vmatpush.msra.mxu0 %v813
    %951 = vmatpush.msra.mxu0 %v811
    %952 = vmatpush.msra.mxu0 %v809
    %953 = vmatpush.msra.mxu0 %v807
    %954 = vmatpush.msra.mxu0 %v805
    %955 = vmatmul.f32.gmra.mxu0 %v801
    %v956 = vpop.f32.mrf.mxu0
    %v957 = vadd.f32 %v935, %v956
    %958 = vdwg.mxu0
    %959 = vmatpush.msra.mxu0 %v867
    %960 = vmatpush.msra.mxu0 %v865
    %961 = vmatpush.msra.mxu0 %v863
    %962 = vmatpush.msra.mxu0 %v861
    %963 = vmatpush.msra.mxu0 %v859
    %964 = vmatpush.msra.mxu0 %v857
    %965 = vmatpush.msra.mxu0 %v855
    %966 = vmatpush.msra.mxu0 %v853
    %967 = vmatpush.msra.mxu0 %v851
    %968 = vmatpush.msra.mxu0 %v849
    %969 = vmatpush.msra.mxu0 %v847
    %970 = vmatpush.msra.mxu0 %v845
    %971 = vmatpush.msra.mxu0 %v843
    %972 = vmatpush.msra.mxu0 %v841
    %973 = vmatpush.msra.mxu0 %v839
    %974 = vmatpush.msra.mxu0 %v837
    %975 = vmatmul.f32.gmra.mxu0 %v802
    %v976 = vpop.f32.mrf.mxu0
    %v977 = vadd.f32 %v957, %v976
    %978 = vdwg.mxu0
    %979 = vmatpush.msra.mxu0 %v899
    %980 = vmatpush.msra.mxu0 %v897
    %981 = vmatpush.msra.mxu0 %v895
    %982 = vmatpush.msra.mxu0 %v893
    %983 = vmatpush.msra.mxu0 %v891
    %984 = vmatpush.msra.mxu0 %v889
    %985 = vmatpush.msra.mxu0 %v887
    %986 = vmatpush.msra.mxu0 %v885
    %987 = vmatpush.msra.mxu0 %v883
    %988 = vmatpush.msra.mxu0 %v881
    %989 = vmatpush.msra.mxu0 %v879
    %990 = vmatpush.msra.mxu0 %v877
    %991 = vmatpush.msra.mxu0 %v875
    %992 = vmatpush.msra.mxu0 %v873
    %993 = vmatpush.msra.mxu0 %v871
    %994 = vmatpush.msra.mxu0 %v869
    %995 = vmatmul.f32.gmra.mxu0 %v803
    %v996 = vpop.f32.mrf.mxu0
    %v997 = vadd.f32 %v977, %v996
    %998 = vdwg.mxu0
    %999 = vmatpush.msra.mxu0 %v931
    %1000 = vmatpush.msra.mxu0 %v929
    %1001 = vmatpush.msra.mxu0 %v927
    %1002 = vmatpush.msra.mxu0 %v925
    %1003 = vmatpush.msra.mxu0 %v923
    %1004 = vmatpush.msra.mxu0 %v921
    %1005 = vmatpush.msra.mxu0 %v919
    %1006 = vmatpush.msra.mxu0 %v917
    %1007 = vmatpush.msra.mxu0 %v915
    %1008 = vmatpush.msra.mxu0 %v913
    %1009 = vmatpush.msra.mxu0 %v911
    %1010 = vmatpush.msra.mxu0 %v909
    %1011 = vmatpush.msra.mxu0 %v907
    %1012 = vmatpush.msra.mxu0 %v905
    %1013 = vmatpush.msra.mxu0 %v903
    %1014 = vmatpush.msra.mxu0 %v901
    %1015 = vmatmul.f32.gmra.mxu0 %v804
    %v1016 = vpop.f32.mrf.mxu0
    %v1017 = vadd.f32 %v997, %v1016
    %1018 = vdwg.mxu0
    %1019 = vmatpush.msra.mxu0 %v836
    %1020 = vmatpush.msra.mxu0 %v834
    %1021 = vmatpush.msra.mxu0 %v832
    %1022 = vmatpush.msra.mxu0 %v830
    %1023 = vmatpush.msra.mxu0 %v828
    %1024 = vmatpush.msra.mxu0 %v826
    %1025 = vmatpush.msra.mxu0 %v824
    %1026 = vmatpush.msra.mxu0 %v822
    %1027 = vmatpush.msra.mxu0 %v820
    %1028 = vmatpush.msra.mxu0 %v818
    %1029 = vmatpush.msra.mxu0 %v816
    %1030 = vmatpush.msra.mxu0 %v814
    %1031 = vmatpush.msra.mxu0 %v812
    %1032 = vmatpush.msra.mxu0 %v810
    %1033 = vmatpush.msra.mxu0 %v808
    %1034 = vmatpush.msra.mxu0 %v806
    %1035 = vmatmul.f32.gmra.mxu0 %v801
    %v1036 = vpop.f32.mrf.mxu0
    %v1037 = vadd.f32 %v936, %v1036
    %1038 = vdwg.mxu0
    %1039 = vmatpush.msra.mxu0 %v868
    %1040 = vmatpush.msra.mxu0 %v866
    %1041 = vmatpush.msra.mxu0 %v864
    %1042 = vmatpush.msra.mxu0 %v862
    %1043 = vmatpush.msra.mxu0 %v860
    %1044 = vmatpush.msra.mxu0 %v858
    %1045 = vmatpush.msra.mxu0 %v856
    %1046 = vmatpush.msra.mxu0 %v854
    %1047 = vmatpush.msra.mxu0 %v852
    %1048 = vmatpush.msra.mxu0 %v850
    %1049 = vmatpush.msra.mxu0 %v848
    %1050 = vmatpush.msra.mxu0 %v846
    %1051 = vmatpush.msra.mxu0 %v844
    %1052 = vmatpush.msra.mxu0 %v842
    %1053 = vmatpush.msra.mxu0 %v840
    %1054 = vmatpush.msra.mxu0 %v838
    %1055 = vmatmul.f32.gmra.mxu0 %v802
    %v1056 = vpop.f32.mrf.mxu0
    %v1057 = vadd.f32 %v1037, %v1056
    %1058 = vdwg.mxu0
    %1059 = vmatpush.msra.mxu0 %v900
    %1060 = vmatpush.msra.mxu0 %v898
    %1061 = vmatpush.msra.mxu0 %v896
    %1062 = vmatpush.msra.mxu0 %v894
    %1063 = vmatpush.msra.mxu0 %v892
    %1064 = vmatpush.msra.mxu0 %v890
    %1065 = vmatpush.msra.mxu0 %v888
    %1066 = vmatpush.msra.mxu0 %v886
    %1067 = vmatpush.msra.mxu0 %v884
    %1068 = vmatpush.msra.mxu0 %v882
    %1069 = vmatpush.msra.mxu0 %v880
    %1070 = vmatpush.msra.mxu0 %v878
    %1071 = vmatpush.msra.mxu0 %v876
    %1072 = vmatpush.msra.mxu0 %v874
    %1073 = vmatpush.msra.mxu0 %v872
    %1074 = vmatpush.msra.mxu0 %v870
    %1075 = vmatmul.f32.gmra.mxu0 %v803
    %v1076 = vpop.f32.mrf.mxu0
    %v1077 = vadd.f32 %v1057, %v1076
    %1078 = vdwg.mxu0
    %1079 = vmatpush.msra.mxu0 %v932
    %1080 = vmatpush.msra.mxu0 %v930
    %1081 = vmatpush.msra.mxu0 %v928
    %1082 = vmatpush.msra.mxu0 %v926
    %1083 = vmatpush.msra.mxu0 %v924
    %1084 = vmatpush.msra.mxu0 %v922
    %1085 = vmatpush.msra.mxu0 %v920
    %1086 = vmatpush.msra.mxu0 %v918
    %1087 = vmatpush.msra.mxu0 %v916
    %1088 = vmatpush.msra.mxu0 %v914
    %1089 = vmatpush.msra.mxu0 %v912
    %1090 = vmatpush.msra.mxu0 %v910
    %1091 = vmatpush.msra.mxu0 %v908
    %1092 = vmatpush.msra.mxu0 %v906
    %1093 = vmatpush.msra.mxu0 %v904
    %1094 = vmatpush.msra.mxu0 %v902
    %1095 = vmatmul.f32.gmra.mxu0 %v804
    %v1096 = vpop.f32.mrf.mxu0
    %v1097 = vadd.f32 %v1077, %v1096
    %1098 = vdwg.mxu0
    %v1099 = vmax.f32 %v1017, 0.0
    %v1100 = vmax.f32 %v1097, 0.0
    %v1101 = vld [vmem:[#allocation4] sm:$0xff]
    %v1102 = vld [vmem:[#allocation4 + $0x8] sm:$0xff]
    %v1103 = vld [vmem:[#allocation4 + $0x10] sm:$0xff]
    %v1104 = vld [vmem:[#allocation4 + $0x18] sm:$0xff]
    %v1105 = vld [vmem:[#allocation4 + $0x20] sm:$0xff]
    %v1106 = vld [vmem:[#allocation4 + $0x28] sm:$0xff]
    %v1107 = vld [vmem:[#allocation4 + $0x30] sm:$0xff]
    %v1108 = vld [vmem:[#allocation4 + $0x38] sm:$0xff]
    %v1109 = vld [vmem:[#allocation4 + $0x40] sm:$0xff]
    %v1110 = vld [vmem:[#allocation4 + $0x48] sm:$0xff]
    %v1111 = vld [vmem:[#allocation4 + $0x50] sm:$0xff]
    %v1112 = vld [vmem:[#allocation4 + $0x58] sm:$0xff]
    %v1113 = vld [vmem:[#allocation4 + $0x60] sm:$0xff]
    %v1114 = vld [vmem:[#allocation4 + $0x68] sm:$0xff]
    %v1115 = vld [vmem:[#allocation4 + $0x70] sm:$0xff]
    %v1116 = vld [vmem:[#allocation4 + $0x78] sm:$0xff]
    %v1117 = vld [vmem:[#allocation4 + $0x80] sm:$0xff]
    %v1118 = vld [vmem:[#allocation4 + $0x88] sm:$0xff]
    %v1119 = vld [vmem:[#allocation4 + $0x90] sm:$0xff]
    %v1120 = vld [vmem:[#allocation4 + $0x98] sm:$0xff]
    %v1121 = vld [vmem:[#allocation4 + $0xa0] sm:$0xff]
    %v1122 = vld [vmem:[#allocation4 + $0xa8] sm:$0xff]
    %v1123 = vld [vmem:[#allocation4 + $0xb0] sm:$0xff]
    %v1124 = vld [vmem:[#allocation4 + $0xb8] sm:$0xff]
    %v1125 = vld [vmem:[#allocation4 + $0xc0] sm:$0xff]
    %v1126 = vld [vmem:[#allocation4 + $0xc8] sm:$0xff]
    %v1127 = vld [vmem:[#allocation4 + $0xd0] sm:$0xff]
    %v1128 = vld [vmem:[#allocation4 + $0xd8] sm:$0xff]
    %v1129 = vld [vmem:[#allocation4 + $0xe0] sm:$0xff]
    %v1130 = vld [vmem:[#allocation4 + $0xe8] sm:$0xff]
    %v1131 = vld [vmem:[#allocation4 + $0xf0] sm:$0xff]
    %v1132 = vld [vmem:[#allocation4 + $0xf8] sm:$0xff]
    %v1133 = vld [vmem:[%s10] sm:$0x1]
    %v1135 = vperm.slane %v1133, 0
    %1137 = vmatpush.msra.mxu0 %v1116
    %1138 = vmatpush.msra.mxu0 %v1115
    %1139 = vmatpush.msra.mxu0 %v1114
    %1140 = vmatpush.msra.mxu0 %v1113
    %1141 = vmatpush.msra.mxu0 %v1112
    %1142 = vmatpush.msra.mxu0 %v1111
    %1143 = vmatpush.msra.mxu0 %v1110
    %1144 = vmatpush.msra.mxu0 %v1109
    %1145 = vmatpush.msra.mxu0 %v1108
    %1146 = vmatpush.msra.mxu0 %v1107
    %1147 = vmatpush.msra.mxu0 %v1106
    %1148 = vmatpush.msra.mxu0 %v1105
    %1149 = vmatpush.msra.mxu0 %v1104
    %1150 = vmatpush.msra.mxu0 %v1103
    %1151 = vmatpush.msra.mxu0 %v1102
    %1152 = vmatpush.msra.mxu0 %v1101
    %1153 = vmatmul.f32.gmra.mxu0 %v1099
    %v1154 = vpop.f32.mrf.mxu0
    %v1155 = vadd.f32 %v1135, %v1154
    %1156 = vdwg.mxu0
    %1157 = vmatpush.msra.mxu0 %v1132
    %1158 = vmatpush.msra.mxu0 %v1131
    %1159 = vmatpush.msra.mxu0 %v1130
    %1160 = vmatpush.msra.mxu0 %v1129
    %1161 = vmatpush.msra.mxu0 %v1128
    %1162 = vmatpush.msra.mxu0 %v1127
    %1163 = vmatpush.msra.mxu0 %v1126
    %1164 = vmatpush.msra.mxu0 %v1125
    %1165 = vmatpush.msra.mxu0 %v1124
    %1166 = vmatpush.msra.mxu0 %v1123
    %1167 = vmatpush.msra.mxu0 %v1122
    %1168 = vmatpush.msra.mxu0 %v1121
    %1169 = vmatpush.msra.mxu0 %v1120
    %1170 = vmatpush.msra.mxu0 %v1119
    %1171 = vmatpush.msra.mxu0 %v1118
    %1172 = vmatpush.msra.mxu0 %v1117
    %1173 = vmatmul.f32.gmra.mxu0 %v1100
    %v1174 = vpop.f32.mrf.mxu0
    %v1175 = vadd.f32 %v1155, %v1174
    %1176 = vdwg.mxu0
    %1177 = vst [vmem:[%s11] sm:$0xff] %v1175
    // Predicated region
    $region54: #{a2c_forward_packed.1} parent=1 // pred_check
      _
    $region55: #{a2c_forward_packed.1} parent=1 // pred_check_branch
      %1179 = sbr.rel (0) target = $region57
    $region56: #{a2c_forward_packed.1} parent=1 // pred_region
      _
    $region57: #{a2c_forward_packed.1} parent=1 // pred_fallthru
      _
    // Predicated region
    $region58: #{a2c_forward_packed.1} parent=1 // pred_check
      _
    $region59: #{a2c_forward_packed.1} parent=1 // pred_check_branch
      %1181 = sbr.rel (0) target = $region61
    $region60: #{a2c_forward_packed.1} parent=1 // pred_region
      _
    $region61: #{a2c_forward_packed.1} parent=1 // pred_fallthru
      _
    %1182 = vsyncpa [#allocation3], 1
    %1183 = vsyncpa [#allocation5], 1

</llo_original>
